<compile_context>
chip_gen: v5e
topology: v5e:2x2
jax: 0.10.0
libtpu: 0.0.40
codegen_flags: <defaults>
</compile_context>

<pallas_src>
import functools

import jax
import jax.numpy as jnp
from jax import lax
from jax.experimental import pallas as pl
from jax.experimental.pallas import tpu as pltpu


def _round_up(a, b):
    return (a + b - 1) // b * b


def _physical_vmem_bytes():
    try:
        return int(pltpu.get_tpu_info().vmem_capacity_bytes)
    except Exception:
        return 64 * 1024 * 1024  # conservative (v7x-sized) fallback


def _choose_lane_tiling(n, lane_cap):
    """Pick L_t (multiple of 128) minimizing sublane padding; Sp rounded only to 8."""
    best = None
    max_l = min(lane_cap, _round_up(n, 128))
    lane = 128
    while lane <= max_l:
        s = -(-n // lane)
        sp = _round_up(s, 8)
        pad = sp * lane - n
        key = (pad, -lane)  # minimize padding, then prefer wider (lane-dense) tiles
        if best is None or key < best[0]:
            best = (key, lane, sp)
        lane += 128
    _, l_t, sp = best
    return l_t, sp


def _choose_sublane_tile(sp, sublane_cap):
    """Largest multiple-of-8 divisor of Sp (<= cap), keeping >=2 spatial tiles if possible."""
    divs = [d for d in range(8, min(sp, sublane_cap) + 1, 8) if sp % d == 0]
    if not divs:
        return 8
    r_t = divs[-1]
    if r_t == sp and sp >= 16:
        sub = [d for d in divs if d <= sp // 2]
        if sub:
            r_t = sub[-1]  # >=2 spatial tiles so both v7x TensorCores get work
    return r_t


def _msf_kernel(x_ref, out_ref, carry_ref, *, decay, init_thre, D, TT, strip_rows):
    """One grid step = one (spatial tile, time chunk). Pre-gated mem carry in VMEM scratch."""
    tc = pl.program_id(1)  # time-chunk index (innermost grid axis)

    @pl.when(tc == 0)
    def _():
        # Pre-gated carry starts at 0  =>  mem_0 = 0 + x[0] = x[0].
        carry_ref[...] = jnp.zeros_like(carry_ref)

    n_strips = carry_ref.shape[0] // strip_rows
    d_max = float(D)

    def strip_body(s, dummy):
        r0 = pl.multiple_of(s * strip_rows, strip_rows)
        c = carry_ref[pl.ds(r0, strip_rows), :]
        for t in range(TT):  # static, unrolled: carry stays in vregs across the chunk
            x_t = x_ref[t, pl.ds(r0, strip_rows), :].astype(jnp.float32)
            mem = c + x_t
            # spike = sum_d [mem >= init_thre + d]  (thresholds are init_thre + 0..D-1)
            spike = jnp.clip(jnp.floor(mem - init_thre) + 1.0, 0.0, d_max)
            out_ref[t, pl.ds(r0, strip_rows), :] = spike.astype(out_ref.dtype)
            # Gate: spike > 0  <=>  mem >= init_thre (init_thre is the smallest threshold).
            c = jnp.where(mem >= init_thre, 0.0, mem * decay)
        carry_ref[pl.ds(r0, strip_rows), :] = c
        return dummy

    lax.fori_loop(0, n_strips, strip_body, 0)


def mem_update_msf(x, decay=0.25, init_thre=0.5, D=4, *, out_dtype=None,
                   lane_cap=2048, sublane_cap=256):
    """x: (T, ...) float -> spike trains, same shape (dtype = out_dtype or x.dtype)."""
    assert D >= 1, "closed-form spike count assumes thresholds init_thre + 0..D-1"
    out_dtype = jnp.dtype(x.dtype if out_dtype is None else out_dtype)
    in_dtype = jnp.dtype(x.dtype)

    T = int(x.shape[0])
    step_shape = tuple(int(d) for d in x.shape[1:])
    N = 1
    for d in step_shape:
        N *= d

    # --- chip-aware budgets -------------------------------------------------
    phys_vmem = _physical_vmem_bytes()
    if phys_vmem <= 80 * 1024 * 1024:          # v7x-class (64 MiB physical VMEM)
        vmem_limit = 52 * 1024 * 1024
        block_budget = 6 * 1024 * 1024
    else:                                       # v5e / v6e (128 MiB physical VMEM)
        vmem_limit = 100 * 1024 * 1024
        block_budget = 12 * 1024 * 1024

    # --- tiling of the flattened per-timestep tensor ------------------------
    L_t, Sp = _choose_lane_tiling(N, lane_cap)     # lanes (mult of 128), padded rows (mult of 8)
    R_t = _choose_sublane_tile(Sp, sublane_cap)    # sublane tile, divides Sp
    Np = Sp * L_t

    # Time chunk: largest divisor of T that keeps the input block within budget
    # (so no host-side time padding is ever needed).
    bytes_per_step = R_t * L_t * max(in_dtype.itemsize, out_dtype.itemsize)
    tt_cap = max(1, block_budget // bytes_per_step)
    TT = 1
    for d in range(1, T + 1):
        if T % d == 0 and d <= tt_cap:
            TT = d
    Tp = T  # TT divides T by construction

    strip_rows = 16 if R_t % 16 == 0 else 8

    # --- host-side reshape; pad only when actually needed -------------------
    x_flat = x.reshape(T, N)
    if Np != N:
        x_flat = jnp.pad(x_flat, ((0, 0), (0, Np - N)))
    x3d = x_flat.reshape(Tp, Sp, L_t)

    kernel = functools.partial(
        _msf_kernel, decay=float(decay), init_thre=float(init_thre), D=int(D),
        TT=TT, strip_rows=strip_rows,
    )

    grid = (Sp // R_t, Tp // TT)  # spatial tiles outer (parallel), time chunks inner

    cost = pl.CostEstimate(
        flops=int(9 * Tp * Sp * L_t),
        transcendentals=0,
        bytes_accessed=int(Tp * Sp * L_t * (in_dtype.itemsize + out_dtype.itemsize)),
    )

    out3d = pl.pallas_call(
        kernel,
        out_shape=jax.ShapeDtypeStruct((Tp, Sp, L_t), out_dtype),
        grid_spec=pltpu.PrefetchScalarGridSpec(
            num_scalar_prefetch=0,
            grid=grid,
            in_specs=[pl.BlockSpec((TT, R_t, L_t), lambda s, tc: (tc, s, 0))],
            out_specs=pl.BlockSpec((TT, R_t, L_t), lambda s, tc: (tc, s, 0)),
            scratch_shapes=[
                pltpu.VMEM((R_t, L_t), jnp.float32),  # pre-gated membrane carry
            ],
        ),
        compiler_params=pltpu.CompilerParams(
            # spatial tiles are independent -> parallel (feeds both v7x TensorCores);
            # time is a true recurrence -> sequential, innermost.
            dimension_semantics=("parallel", "arbitrary"),
            vmem_limit_bytes=vmem_limit,
        ),
        cost_estimate=cost,
    )(x3d)

    out_flat = out3d.reshape(Tp, Np)
    if Np != N:
        out_flat = out_flat[:, :N]
    return out_flat.reshape((T,) + step_shape)


def _reference(x, decay=0.25, init_thre=0.5, D=4):
    """Pure-JAX reference mirroring the PyTorch loop."""
    T = x.shape[0]
    spike = jnp.zeros_like(x[0])
    mem_old = jnp.zeros_like(x[0])
    outs = []
    for i in range(T):
        if i >= 1:
            mask = (spike > 0).astype(x.dtype)
            mem = mem_old * decay * (1.0 - mask) + x[i]
        else:
            mem = x[i]
        spike = sum(
            (mem >= (init_thre + float(d))).astype(x.dtype) for d in range(D)
        )
        mem_old = mem
        outs.append(spike)
    return jnp.stack(outs, axis=0)


if __name__ == "__main__":
    key = jax.random.PRNGKey(0)

    # Main check: time=8, batch=2, channels=4, spatial=16x16; values straddle
    # the multi-thresholds {0.5, 1.5, 2.5, 3.5}.
    T, B, C, H, W = 8, 2, 4, 16, 16
    k1, k2 = jax.random.split(key)
    x = jax.random.uniform(k1, (T, B, C, H, W), dtype=jnp.float32) * 5.0 - 0.5

    out = jax.block_until_ready(mem_update_msf(x))
    ref = _reference(x)
    assert out.shape == x.shape and out.dtype == x.dtype
    assert jnp.allclose(out, ref), "Pallas kernel mismatch vs reference (aligned case)"

    # Secondary check: ragged shapes exercising the spatial-padding path.
    T2, B2, C2, H2, W2 = 5, 2, 3, 7, 9
    x2 = jax.random.uniform(k2, (T2, B2, C2, H2, W2), dtype=jnp.float32) * 5.0 - 0.5
    out2 = jax.block_until_ready(mem_update_msf(x2))
    ref2 = _reference(x2)
    assert out2.shape == x2.shape
    assert jnp.allclose(out2, ref2), "Pallas kernel mismatch vs reference (padded case)"

    print("KERNEL_OK")
</pallas_src>

<mosaic_0001>
module attributes {stable_mosaic.version = 11 : i64} {
  func.func @_msf_kernel(%arg0: i32, %arg1: i32, %arg2: memref<8x8x256xf32, #tpu.memory_space<vmem>>, %arg3: memref<8x8x256xf32, #tpu.memory_space<vmem>>, %arg4: memref<8x256xf32, #tpu.memory_space<vmem>>) attributes {dimension_semantics = [#tpu.dimension_semantics<parallel>, #tpu.dimension_semantics<arbitrary>], iteration_bounds = array<i64: 1, 1>, scalar_prefetch = 0 : i64, scratch_operands = 1 : i64, tpu.core_type = #tpu.core_type<tc>, window_params = [{transform_indices = @transform_0, window_bounds = array<i64: 8, 8, 256>}, {transform_indices = @transform_1, window_bounds = array<i64: 8, 8, 256>}]} {
    %c0_i32 = arith.constant 0 : i32
    %0 = arith.cmpi eq, %arg1, %c0_i32 : i32
    %1 = arith.extui %0 : i1 to i32
    %c0_i32_0 = arith.constant 0 : i32
    %2 = arith.cmpi ne, %1, %c0_i32_0 : i32
    scf.if %2 {
      %cst_83 = arith.constant 0.000000e+00 : f32
      %193 = vector.broadcast %cst_83 : f32 to vector<8x256xf32>
      %c0_84 = arith.constant 0 : index
      %c0_85 = arith.constant 0 : index
      %194 = vector.load %arg4[%c0_84, %c0_85] : memref<8x256xf32, #tpu.memory_space<vmem>>, vector<8x256xf32>
      tpu.vector_store %arg4[%c0_84, %c0_85], %193 {strides = array<i32>} : memref<8x256xf32, #tpu.memory_space<vmem>>, vector<8x256xf32>,
    } else {
    }
    %c0_i32_1 = arith.constant 0 : i32
    %c8_i32 = arith.constant 8 : i32
    %3 = arith.muli %c0_i32_1, %c8_i32 : i32
    %4 = tpu.assume_multiple %3, 8 : i32
    %5 = arith.index_cast %4 : i32 to index
    %c0 = arith.constant 0 : index
    %6 = vector.load %arg4[%5, %c0] : memref<8x256xf32, #tpu.memory_space<vmem>>, vector<8x256xf32>
    %c0_2 = arith.constant 0 : index
    %7 = arith.index_cast %4 : i32 to index
    %c0_3 = arith.constant 0 : index
    %8 = vector.load %arg2[%c0_2, %7, %c0_3] : memref<8x8x256xf32, #tpu.memory_space<vmem>>, vector<1x8x256xf32>
    %9 = vector.shape_cast %8 : vector<1x8x256xf32> to vector<8x256xf32>
    %10 = arith.addf %6, %9 : vector<8x256xf32>
    %cst = arith.constant 5.000000e-01 : f32
    %11 = vector.broadcast %cst : f32 to vector<8x256xf32>
    %12 = arith.subf %10, %11 : vector<8x256xf32>
    %13 = math.floor %12 : vector<8x256xf32>
    %cst_4 = arith.constant 1.000000e+00 : f32
    %14 = vector.broadcast %cst_4 : f32 to vector<8x256xf32>
    %15 = arith.addf %13, %14 : vector<8x256xf32>
    %cst_5 = arith.constant 0.000000e+00 : f32
    %cst_6 = arith.constant 4.000000e+00 : f32
    %16 = vector.broadcast %cst_5 : f32 to vector<8x256xf32>
    %17 = arith.maximumf %16, %15 : vector<8x256xf32>
    %18 = vector.broadcast %cst_6 : f32 to vector<8x256xf32>
    %19 = arith.minimumf %18, %17 : vector<8x256xf32>
    %c0_7 = arith.constant 0 : index
    %20 = arith.index_cast %4 : i32 to index
    %c0_8 = arith.constant 0 : index
    %21 = vector.load %arg3[%c0_7, %20, %c0_8] : memref<8x8x256xf32, #tpu.memory_space<vmem>>, vector<1x8x256xf32>
    %22 = vector.shape_cast %21 : vector<1x8x256xf32> to vector<8x256xf32>
    %23 = vector.shape_cast %19 : vector<8x256xf32> to vector<1x8x256xf32>
    tpu.vector_store %arg3[%c0_7, %20, %c0_8], %23 {strides = array<i32>} : memref<8x8x256xf32, #tpu.memory_space<vmem>>, vector<1x8x256xf32>,
    %cst_9 = arith.constant 5.000000e-01 : f32
    %24 = vector.broadcast %cst_9 : f32 to vector<8x256xf32>
    %25 = arith.cmpf oge, %10, %24 : vector<8x256xf32>
    %cst_10 = arith.constant 2.500000e-01 : f32
    %26 = vector.broadcast %cst_10 : f32 to vector<8x256xf32>
    %27 = arith.mulf %10, %26 : vector<8x256xf32>
    %cst_11 = arith.constant 0.000000e+00 : f32
    %28 = vector.broadcast %cst_11 : f32 to vector<8x256xf32>
    %29 = arith.select %25, %28, %27 : vector<8x256xi1>, vector<8x256xf32>
    %c1 = arith.constant 1 : index
    %30 = arith.index_cast %4 : i32 to index
    %c0_12 = arith.constant 0 : index
    %31 = vector.load %arg2[%c1, %30, %c0_12] : memref<8x8x256xf32, #tpu.memory_space<vmem>>, vector<1x8x256xf32>
    %32 = vector.shape_cast %31 : vector<1x8x256xf32> to vector<8x256xf32>
    %33 = arith.addf %29, %32 : vector<8x256xf32>
    %cst_13 = arith.constant 5.000000e-01 : f32
    %34 = vector.broadcast %cst_13 : f32 to vector<8x256xf32>
    %35 = arith.subf %33, %34 : vector<8x256xf32>
    %36 = math.floor %35 : vector<8x256xf32>
    %cst_14 = arith.constant 1.000000e+00 : f32
    %37 = vector.broadcast %cst_14 : f32 to vector<8x256xf32>
    %38 = arith.addf %36, %37 : vector<8x256xf32>
    %cst_15 = arith.constant 0.000000e+00 : f32
    %cst_16 = arith.constant 4.000000e+00 : f32
    %39 = vector.broadcast %cst_15 : f32 to vector<8x256xf32>
    %40 = arith.maximumf %39, %38 : vector<8x256xf32>
    %41 = vector.broadcast %cst_16 : f32 to vector<8x256xf32>
    %42 = arith.minimumf %41, %40 : vector<8x256xf32>
    %c1_17 = arith.constant 1 : index
    %43 = arith.index_cast %4 : i32 to index
    %c0_18 = arith.constant 0 : index
    %44 = vector.load %arg3[%c1_17, %43, %c0_18] : memref<8x8x256xf32, #tpu.memory_space<vmem>>, vector<1x8x256xf32>
    %45 = vector.shape_cast %44 : vector<1x8x256xf32> to vector<8x256xf32>
    %46 = vector.shape_cast %42 : vector<8x256xf32> to vector<1x8x256xf32>
    tpu.vector_store %arg3[%c1_17, %43, %c0_18], %46 {strides = array<i32>} : memref<8x8x256xf32, #tpu.memory_space<vmem>>, vector<1x8x256xf32>,
    %cst_19 = arith.constant 5.000000e-01 : f32
    %47 = vector.broadcast %cst_19 : f32 to vector<8x256xf32>
    %48 = arith.cmpf oge, %33, %47 : vector<8x256xf32>
    %cst_20 = arith.constant 2.500000e-01 : f32
    %49 = vector.broadcast %cst_20 : f32 to vector<8x256xf32>
    %50 = arith.mulf %33, %49 : vector<8x256xf32>
    %cst_21 = arith.constant 0.000000e+00 : f32
    %51 = vector.broadcast %cst_21 : f32 to vector<8x256xf32>
    %52 = arith.select %48, %51, %50 : vector<8x256xi1>, vector<8x256xf32>
    %c2 = arith.constant 2 : index
    %53 = arith.index_cast %4 : i32 to index
    %c0_22 = arith.constant 0 : index
    %54 = vector.load %arg2[%c2, %53, %c0_22] : memref<8x8x256xf32, #tpu.memory_space<vmem>>, vector<1x8x256xf32>
    %55 = vector.shape_cast %54 : vector<1x8x256xf32> to vector<8x256xf32>
    %56 = arith.addf %52, %55 : vector<8x256xf32>
    %cst_23 = arith.constant 5.000000e-01 : f32
    %57 = vector.broadcast %cst_23 : f32 to vector<8x256xf32>
    %58 = arith.subf %56, %57 : vector<8x256xf32>
    %59 = math.floor %58 : vector<8x256xf32>
    %cst_24 = arith.constant 1.000000e+00 : f32
    %60 = vector.broadcast %cst_24 : f32 to vector<8x256xf32>
    %61 = arith.addf %59, %60 : vector<8x256xf32>
    %cst_25 = arith.constant 0.000000e+00 : f32
    %cst_26 = arith.constant 4.000000e+00 : f32
    %62 = vector.broadcast %cst_25 : f32 to vector<8x256xf32>
    %63 = arith.maximumf %62, %61 : vector<8x256xf32>
    %64 = vector.broadcast %cst_26 : f32 to vector<8x256xf32>
    %65 = arith.minimumf %64, %63 : vector<8x256xf32>
    %c2_27 = arith.constant 2 : index
    %66 = arith.index_cast %4 : i32 to index
    %c0_28 = arith.constant 0 : index
    %67 = vector.load %arg3[%c2_27, %66, %c0_28] : memref<8x8x256xf32, #tpu.memory_space<vmem>>, vector<1x8x256xf32>
    %68 = vector.shape_cast %67 : vector<1x8x256xf32> to vector<8x256xf32>
    %69 = vector.shape_cast %65 : vector<8x256xf32> to vector<1x8x256xf32>
    tpu.vector_store %arg3[%c2_27, %66, %c0_28], %69 {strides = array<i32>} : memref<8x8x256xf32, #tpu.memory_space<vmem>>, vector<1x8x256xf32>,
    %cst_29 = arith.constant 5.000000e-01 : f32
    %70 = vector.broadcast %cst_29 : f32 to vector<8x256xf32>
    %71 = arith.cmpf oge, %56, %70 : vector<8x256xf32>
    %cst_30 = arith.constant 2.500000e-01 : f32
    %72 = vector.broadcast %cst_30 : f32 to vector<8x256xf32>
    %73 = arith.mulf %56, %72 : vector<8x256xf32>
    %cst_31 = arith.constant 0.000000e+00 : f32
    %74 = vector.broadcast %cst_31 : f32 to vector<8x256xf32>
    %75 = arith.select %71, %74, %73 : vector<8x256xi1>, vector<8x256xf32>
    %c3 = arith.constant 3 : index
    %76 = arith.index_cast %4 : i32 to index
    %c0_32 = arith.constant 0 : index
    %77 = vector.load %arg2[%c3, %76, %c0_32] : memref<8x8x256xf32, #tpu.memory_space<vmem>>, vector<1x8x256xf32>
    %78 = vector.shape_cast %77 : vector<1x8x256xf32> to vector<8x256xf32>
    %79 = arith.addf %75, %78 : vector<8x256xf32>
    %cst_33 = arith.constant 5.000000e-01 : f32
    %80 = vector.broadcast %cst_33 : f32 to vector<8x256xf32>
    %81 = arith.subf %79, %80 : vector<8x256xf32>
    %82 = math.floor %81 : vector<8x256xf32>
    %cst_34 = arith.constant 1.000000e+00 : f32
    %83 = vector.broadcast %cst_34 : f32 to vector<8x256xf32>
    %84 = arith.addf %82, %83 : vector<8x256xf32>
    %cst_35 = arith.constant 0.000000e+00 : f32
    %cst_36 = arith.constant 4.000000e+00 : f32
    %85 = vector.broadcast %cst_35 : f32 to vector<8x256xf32>
    %86 = arith.maximumf %85, %84 : vector<8x256xf32>
    %87 = vector.broadcast %cst_36 : f32 to vector<8x256xf32>
    %88 = arith.minimumf %87, %86 : vector<8x256xf32>
    %c3_37 = arith.constant 3 : index
    %89 = arith.index_cast %4 : i32 to index
    %c0_38 = arith.constant 0 : index
    %90 = vector.load %arg3[%c3_37, %89, %c0_38] : memref<8x8x256xf32, #tpu.memory_space<vmem>>, vector<1x8x256xf32>
    %91 = vector.shape_cast %90 : vector<1x8x256xf32> to vector<8x256xf32>
    %92 = vector.shape_cast %88 : vector<8x256xf32> to vector<1x8x256xf32>
    tpu.vector_store %arg3[%c3_37, %89, %c0_38], %92 {strides = array<i32>} : memref<8x8x256xf32, #tpu.memory_space<vmem>>, vector<1x8x256xf32>,
    %cst_39 = arith.constant 5.000000e-01 : f32
    %93 = vector.broadcast %cst_39 : f32 to vector<8x256xf32>
    %94 = arith.cmpf oge, %79, %93 : vector<8x256xf32>
    %cst_40 = arith.constant 2.500000e-01 : f32
    %95 = vector.broadcast %cst_40 : f32 to vector<8x256xf32>
    %96 = arith.mulf %79, %95 : vector<8x256xf32>
    %cst_41 = arith.constant 0.000000e+00 : f32
    %97 = vector.broadcast %cst_41 : f32 to vector<8x256xf32>
    %98 = arith.select %94, %97, %96 : vector<8x256xi1>, vector<8x256xf32>
    %c4 = arith.constant 4 : index
    %99 = arith.index_cast %4 : i32 to index
    %c0_42 = arith.constant 0 : index
    %100 = vector.load %arg2[%c4, %99, %c0_42] : memref<8x8x256xf32, #tpu.memory_space<vmem>>, vector<1x8x256xf32>
    %101 = vector.shape_cast %100 : vector<1x8x256xf32> to vector<8x256xf32>
    %102 = arith.addf %98, %101 : vector<8x256xf32>
    %cst_43 = arith.constant 5.000000e-01 : f32
    %103 = vector.broadcast %cst_43 : f32 to vector<8x256xf32>
    %104 = arith.subf %102, %103 : vector<8x256xf32>
    %105 = math.floor %104 : vector<8x256xf32>
    %cst_44 = arith.constant 1.000000e+00 : f32
    %106 = vector.broadcast %cst_44 : f32 to vector<8x256xf32>
    %107 = arith.addf %105, %106 : vector<8x256xf32>
    %cst_45 = arith.constant 0.000000e+00 : f32
    %cst_46 = arith.constant 4.000000e+00 : f32
    %108 = vector.broadcast %cst_45 : f32 to vector<8x256xf32>
    %109 = arith.maximumf %108, %107 : vector<8x256xf32>
    %110 = vector.broadcast %cst_46 : f32 to vector<8x256xf32>
    %111 = arith.minimumf %110, %109 : vector<8x256xf32>
    %c4_47 = arith.constant 4 : index
    %112 = arith.index_cast %4 : i32 to index
    %c0_48 = arith.constant 0 : index
    %113 = vector.load %arg3[%c4_47, %112, %c0_48] : memref<8x8x256xf32, #tpu.memory_space<vmem>>, vector<1x8x256xf32>
    %114 = vector.shape_cast %113 : vector<1x8x256xf32> to vector<8x256xf32>
    %115 = vector.shape_cast %111 : vector<8x256xf32> to vector<1x8x256xf32>
    tpu.vector_store %arg3[%c4_47, %112, %c0_48], %115 {strides = array<i32>} : memref<8x8x256xf32, #tpu.memory_space<vmem>>, vector<1x8x256xf32>,
    %cst_49 = arith.constant 5.000000e-01 : f32
    %116 = vector.broadcast %cst_49 : f32 to vector<8x256xf32>
    %117 = arith.cmpf oge, %102, %116 : vector<8x256xf32>
    %cst_50 = arith.constant 2.500000e-01 : f32
    %118 = vector.broadcast %cst_50 : f32 to vector<8x256xf32>
    %119 = arith.mulf %102, %118 : vector<8x256xf32>
    %cst_51 = arith.constant 0.000000e+00 : f32
    %120 = vector.broadcast %cst_51 : f32 to vector<8x256xf32>
    %121 = arith.select %117, %120, %119 : vector<8x256xi1>, vector<8x256xf32>
    %c5 = arith.constant 5 : index
    %122 = arith.index_cast %4 : i32 to index
    %c0_52 = arith.constant 0 : index
    %123 = vector.load %arg2[%c5, %122, %c0_52] : memref<8x8x256xf32, #tpu.memory_space<vmem>>, vector<1x8x256xf32>
    %124 = vector.shape_cast %123 : vector<1x8x256xf32> to vector<8x256xf32>
    %125 = arith.addf %121, %124 : vector<8x256xf32>
    %cst_53 = arith.constant 5.000000e-01 : f32
    %126 = vector.broadcast %cst_53 : f32 to vector<8x256xf32>
    %127 = arith.subf %125, %126 : vector<8x256xf32>
    %128 = math.floor %127 : vector<8x256xf32>
    %cst_54 = arith.constant 1.000000e+00 : f32
    %129 = vector.broadcast %cst_54 : f32 to vector<8x256xf32>
    %130 = arith.addf %128, %129 : vector<8x256xf32>
    %cst_55 = arith.constant 0.000000e+00 : f32
    %cst_56 = arith.constant 4.000000e+00 : f32
    %131 = vector.broadcast %cst_55 : f32 to vector<8x256xf32>
    %132 = arith.maximumf %131, %130 : vector<8x256xf32>
    %133 = vector.broadcast %cst_56 : f32 to vector<8x256xf32>
    %134 = arith.minimumf %133, %132 : vector<8x256xf32>
    %c5_57 = arith.constant 5 : index
    %135 = arith.index_cast %4 : i32 to index
    %c0_58 = arith.constant 0 : index
    %136 = vector.load %arg3[%c5_57, %135, %c0_58] : memref<8x8x256xf32, #tpu.memory_space<vmem>>, vector<1x8x256xf32>
    %137 = vector.shape_cast %136 : vector<1x8x256xf32> to vector<8x256xf32>
    %138 = vector.shape_cast %134 : vector<8x256xf32> to vector<1x8x256xf32>
    tpu.vector_store %arg3[%c5_57, %135, %c0_58], %138 {strides = array<i32>} : memref<8x8x256xf32, #tpu.memory_space<vmem>>, vector<1x8x256xf32>,
    %cst_59 = arith.constant 5.000000e-01 : f32
    %139 = vector.broadcast %cst_59 : f32 to vector<8x256xf32>
    %140 = arith.cmpf oge, %125, %139 : vector<8x256xf32>
    %cst_60 = arith.constant 2.500000e-01 : f32
    %141 = vector.broadcast %cst_60 : f32 to vector<8x256xf32>
    %142 = arith.mulf %125, %141 : vector<8x256xf32>
    %cst_61 = arith.constant 0.000000e+00 : f32
    %143 = vector.broadcast %cst_61 : f32 to vector<8x256xf32>
    %144 = arith.select %140, %143, %142 : vector<8x256xi1>, vector<8x256xf32>
    %c6 = arith.constant 6 : index
    %145 = arith.index_cast %4 : i32 to index
    %c0_62 = arith.constant 0 : index
    %146 = vector.load %arg2[%c6, %145, %c0_62] : memref<8x8x256xf32, #tpu.memory_space<vmem>>, vector<1x8x256xf32>
    %147 = vector.shape_cast %146 : vector<1x8x256xf32> to vector<8x256xf32>
    %148 = arith.addf %144, %147 : vector<8x256xf32>
    %cst_63 = arith.constant 5.000000e-01 : f32
    %149 = vector.broadcast %cst_63 : f32 to vector<8x256xf32>
    %150 = arith.subf %148, %149 : vector<8x256xf32>
    %151 = math.floor %150 : vector<8x256xf32>
    %cst_64 = arith.constant 1.000000e+00 : f32
    %152 = vector.broadcast %cst_64 : f32 to vector<8x256xf32>
    %153 = arith.addf %151, %152 : vector<8x256xf32>
    %cst_65 = arith.constant 0.000000e+00 : f32
    %cst_66 = arith.constant 4.000000e+00 : f32
    %154 = vector.broadcast %cst_65 : f32 to vector<8x256xf32>
    %155 = arith.maximumf %154, %153 : vector<8x256xf32>
    %156 = vector.broadcast %cst_66 : f32 to vector<8x256xf32>
    %157 = arith.minimumf %156, %155 : vector<8x256xf32>
    %c6_67 = arith.constant 6 : index
    %158 = arith.index_cast %4 : i32 to index
    %c0_68 = arith.constant 0 : index
    %159 = vector.load %arg3[%c6_67, %158, %c0_68] : memref<8x8x256xf32, #tpu.memory_space<vmem>>, vector<1x8x256xf32>
    %160 = vector.shape_cast %159 : vector<1x8x256xf32> to vector<8x256xf32>
    %161 = vector.shape_cast %157 : vector<8x256xf32> to vector<1x8x256xf32>
    tpu.vector_store %arg3[%c6_67, %158, %c0_68], %161 {strides = array<i32>} : memref<8x8x256xf32, #tpu.memory_space<vmem>>, vector<1x8x256xf32>,
    %cst_69 = arith.constant 5.000000e-01 : f32
    %162 = vector.broadcast %cst_69 : f32 to vector<8x256xf32>
    %163 = arith.cmpf oge, %148, %162 : vector<8x256xf32>
    %cst_70 = arith.constant 2.500000e-01 : f32
    %164 = vector.broadcast %cst_70 : f32 to vector<8x256xf32>
    %165 = arith.mulf %148, %164 : vector<8x256xf32>
    %cst_71 = arith.constant 0.000000e+00 : f32
    %166 = vector.broadcast %cst_71 : f32 to vector<8x256xf32>
    %167 = arith.select %163, %166, %165 : vector<8x256xi1>, vector<8x256xf32>
    %c7 = arith.constant 7 : index
    %168 = arith.index_cast %4 : i32 to index
    %c0_72 = arith.constant 0 : index
    %169 = vector.load %arg2[%c7, %168, %c0_72] : memref<8x8x256xf32, #tpu.memory_space<vmem>>, vector<1x8x256xf32>
    %170 = vector.shape_cast %169 : vector<1x8x256xf32> to vector<8x256xf32>
    %171 = arith.addf %167, %170 : vector<8x256xf32>
    %cst_73 = arith.constant 5.000000e-01 : f32
    %172 = vector.broadcast %cst_73 : f32 to vector<8x256xf32>
    %173 = arith.subf %171, %172 : vector<8x256xf32>
    %174 = math.floor %173 : vector<8x256xf32>
    %cst_74 = arith.constant 1.000000e+00 : f32
    %175 = vector.broadcast %cst_74 : f32 to vector<8x256xf32>
    %176 = arith.addf %174, %175 : vector<8x256xf32>
    %cst_75 = arith.constant 0.000000e+00 : f32
    %cst_76 = arith.constant 4.000000e+00 : f32
    %177 = vector.broadcast %cst_75 : f32 to vector<8x256xf32>
    %178 = arith.maximumf %177, %176 : vector<8x256xf32>
    %179 = vector.broadcast %cst_76 : f32 to vector<8x256xf32>
    %180 = arith.minimumf %179, %178 : vector<8x256xf32>
    %c7_77 = arith.constant 7 : index
    %181 = arith.index_cast %4 : i32 to index
    %c0_78 = arith.constant 0 : index
    %182 = vector.load %arg3[%c7_77, %181, %c0_78] : memref<8x8x256xf32, #tpu.memory_space<vmem>>, vector<1x8x256xf32>
    %183 = vector.shape_cast %182 : vector<1x8x256xf32> to vector<8x256xf32>
    %184 = vector.shape_cast %180 : vector<8x256xf32> to vector<1x8x256xf32>
    tpu.vector_store %arg3[%c7_77, %181, %c0_78], %184 {strides = array<i32>} : memref<8x8x256xf32, #tpu.memory_space<vmem>>, vector<1x8x256xf32>,
    %cst_79 = arith.constant 5.000000e-01 : f32
    %185 = vector.broadcast %cst_79 : f32 to vector<8x256xf32>
    %186 = arith.cmpf oge, %171, %185 : vector<8x256xf32>
    %cst_80 = arith.constant 2.500000e-01 : f32
    %187 = vector.broadcast %cst_80 : f32 to vector<8x256xf32>
    %188 = arith.mulf %171, %187 : vector<8x256xf32>
    %cst_81 = arith.constant 0.000000e+00 : f32
    %189 = vector.broadcast %cst_81 : f32 to vector<8x256xf32>
    %190 = arith.select %186, %189, %188 : vector<8x256xi1>, vector<8x256xf32>
    %191 = arith.index_cast %4 : i32 to index
    %c0_82 = arith.constant 0 : index
    %192 = vector.load %arg4[%191, %c0_82] : memref<8x256xf32, #tpu.memory_space<vmem>>, vector<8x256xf32>
    tpu.vector_store %arg4[%191, %c0_82], %190 {strides = array<i32>} : memref<8x256xf32, #tpu.memory_space<vmem>>, vector<8x256xf32>,
    %c1_i32 = arith.constant 1 : i32
    return
  }
  func.func @transform_0(%arg0: i32, %arg1: i32) -> (i32, i32, i32) {
    %c0_i32 = arith.constant 0 : i32
    %c0_i32_0 = arith.constant 0 : i32
    return %arg1, %arg0, %c0_i32 : i32, i32, i32
  }
  func.func @transform_1(%arg0: i32, %arg1: i32) -> (i32, i32, i32) {
    %c0_i32 = arith.constant 0 : i32
    %c0_i32_0 = arith.constant 0 : i32
    return %arg1, %arg0, %c0_i32 : i32, i32, i32
  }
}

</mosaic_0001>

<llo_original>
// kernel: tpu_custom_call.1
$region0: #{tpu_custom_call.1}
  #allocation0 [shape = 'u32[]', space=smem, size = 0x4, offset = 0x4, fixed_abs, tag = 'smem constant byte address 0x4 - core index']
  #allocation1 [shape = 'u32[72,128]{1,0:T(1,128)}', space=vmem, size = 0x9000, scoped, tag = 'internal scratch']
  #allocation2 [shape = 'f32[8,256]{1,0:T(8,128)}', space=vmem, size = 0x2000, scoped, tag = 'scratch operand']
  %s0 = inlined_call_operand.hbm [shape: f32[8,8,256], index: 0, kind: input, shape index: {}]
  %s1 = inlined_call_operand.hbm [shape: f32[8,8,256], index: 1, kind: output, shape index: {}]
  %s2 = sld [smem:[#allocation0]]
  $region22: #{tpu_custom_call.1} parent=0
    _
  %s4 = ssub.s32 1, %s2
  %s5 = scalar_select 0, %s4, %s2
  $region1: #{tpu_custom_call.1} parent=0
    #allocation3 [shape = 'u8[65536]{0}', space=vmem, size = 0x10000, scoped, tag = 'input window, operand 0, single buffered']
    #allocation4 [shape = 's32[1]{0}', space=sflag, size = 0x4, scoped, tag = 'scoped memory for tpu_custom_call.1']
    #allocation5 [shape = 's32[1]{0}', space=sflag, size = 0x4, scoped, tag = 'scoped memory for tpu_custom_call.1']
    #allocation6 [shape = 'u8[65536]{0}', space=vmem, size = 0x10000, scoped, tag = 'output window, operand 0, single buffered']
    %6 = vsyncpa [#allocation4], 0
    %7 = vsyncpa [#allocation5], 0
    // Predicated region
    $region2: #{tpu_custom_call.1} parent=1 // pred_check
      _
    $region3: #{tpu_custom_call.1} parent=1 // pred_check_branch
      %9 = sbr.rel (0) target = $region5
    $region4: #{tpu_custom_call.1} parent=1 // pred_region
      %11 = vsyncadd [#allocation4], 0
      %s12 = sshll.u32 %s0, 4
      %s13 = int_to_ptr.hbm [resolvable:$true] %s12
      %s14 = sshll.u32 [#allocation3], 4
      %s15 = int_to_ptr.vmem [resolvable:$true] %s14
      %20 = dma.hbm_to_vmem [thread:$0]  %s13, 2048, %s15, [#allocation4], 256, 256, 16
    $region5: #{tpu_custom_call.1} parent=1 // pred_fallthru
      _
    // Predicated region
    $region6: #{tpu_custom_call.1} parent=1 // pred_check
      _
    $region7: #{tpu_custom_call.1} parent=1 // pred_check_branch
      %22 = sbr.rel (0) target = $region9
    $region8: #{tpu_custom_call.1} parent=1 // pred_region
      %24 = dma.done [#allocation4], 2048
    $region9: #{tpu_custom_call.1} parent=1 // pred_fallthru
      _
    %p25 = scmp.eq.s32.totalorder 0, 0
    // Predicated region
    $region10: #{tpu_custom_call.1} parent=1 // pred_check
      %p26 = pneg %p25
    $region11: #{tpu_custom_call.1} parent=1 // pred_check_branch
      %28 = sbr.rel (%p26) target = $region13
    $region12: #{tpu_custom_call.1} parent=1 // pred_region
      %29 = vst [vmem:[#allocation2] sm:$0xff] 0.0
      %30 = vst [vmem:[#allocation2 + $0x8] sm:$0xff] 0.0
    $region13: #{tpu_custom_call.1} parent=1 // pred_fallthru
      _
    %s31 = smul.u32 0, 2
    %s32 = smul.addr %s31, 8
    %s33 = scalar_lea.vmem [#allocation2], %s32
    %v34 = vld [vmem:[%s33] sm:$0xff]
    %v35 = vld [vmem:[%s33 + $0x8] sm:$0xff]
    %s36 = smul.addr %s31, 8
    %s37 = scalar_lea.vmem [#allocation3], %s36
    %v38 = vld [vmem:[%s37] sm:$0xff]
    %v39 = vld [vmem:[%s37 + $0x8] sm:$0xff]
    %v40 = vadd.f32 %v34, %v38
    %v41 = vadd.f32 %v35, %v39
    %v42 = vsub.f32 %v40, 0.5
    %v43 = vsub.f32 %v41, 0.5
    %v44 = vfloor.f32 %v42
    %v45 = vfloor.f32 %v43
    %v46 = vadd.f32 %v44, 1.0
    %v47 = vadd.f32 %v45, 1.0
    %v48 = vmax.f32 %v46, 0.0
    %v49 = vmax.f32 %v47, 0.0
    %v50 = vmin.f32 %v48, 4.0
    %v51 = vmin.f32 %v49, 4.0
    %s52 = smul.addr %s31, 8
    %s53 = scalar_lea.vmem [#allocation6], %s52
    %54 = vst [vmem:[%s53] sm:$0xff] %v50
    %55 = vst [vmem:[%s53 + $0x8] sm:$0xff] %v51
    %vm56 = vcmp.ge.f32.partialorder %v40, 0.5
    %vm57 = vcmp.ge.f32.partialorder %v41, 0.5
    %v58 = vmul.f32 %v40, 0.25
    %v59 = vmul.f32 %v41, 0.25
    %v60 = vsel %vm56, 0.0, %v58
    %v61 = vsel %vm57, 0.0, %v59
    %s62 = sadd.s32 %s31, 2
    %s63 = smul.addr %s62, 8
    %s64 = scalar_lea.vmem [#allocation3], %s63
    %v65 = vld [vmem:[%s64] sm:$0xff]
    %v66 = vld [vmem:[%s64 + $0x8] sm:$0xff]
    %v67 = vadd.f32 %v60, %v65
    %v68 = vadd.f32 %v61, %v66
    %v69 = vsub.f32 %v67, 0.5
    %v70 = vsub.f32 %v68, 0.5
    %v71 = vfloor.f32 %v69
    %v72 = vfloor.f32 %v70
    %v73 = vadd.f32 %v71, 1.0
    %v74 = vadd.f32 %v72, 1.0
    %v75 = vmax.f32 %v73, 0.0
    %v76 = vmax.f32 %v74, 0.0
    %v77 = vmin.f32 %v75, 4.0
    %v78 = vmin.f32 %v76, 4.0
    %s79 = smul.addr %s62, 8
    %s80 = scalar_lea.vmem [#allocation6], %s79
    %81 = vst [vmem:[%s80] sm:$0xff] %v77
    %82 = vst [vmem:[%s80 + $0x8] sm:$0xff] %v78
    %vm83 = vcmp.ge.f32.partialorder %v67, 0.5
    %vm84 = vcmp.ge.f32.partialorder %v68, 0.5
    %v85 = vmul.f32 %v67, 0.25
    %v86 = vmul.f32 %v68, 0.25
    %v87 = vsel %vm83, 0.0, %v85
    %v88 = vsel %vm84, 0.0, %v86
    %s89 = sadd.s32 %s31, 4
    %s90 = smul.addr %s89, 8
    %s91 = scalar_lea.vmem [#allocation3], %s90
    %v92 = vld [vmem:[%s91] sm:$0xff]
    %v93 = vld [vmem:[%s91 + $0x8] sm:$0xff]
    %v94 = vadd.f32 %v87, %v92
    %v95 = vadd.f32 %v88, %v93
    %v96 = vsub.f32 %v94, 0.5
    %v97 = vsub.f32 %v95, 0.5
    %v98 = vfloor.f32 %v96
    %v99 = vfloor.f32 %v97
    %v100 = vadd.f32 %v98, 1.0
    %v101 = vadd.f32 %v99, 1.0
    %v102 = vmax.f32 %v100, 0.0
    %v103 = vmax.f32 %v101, 0.0
    %v104 = vmin.f32 %v102, 4.0
    %v105 = vmin.f32 %v103, 4.0
    %s106 = smul.addr %s89, 8
    %s107 = scalar_lea.vmem [#allocation6], %s106
    %108 = vst [vmem:[%s107] sm:$0xff] %v104
    %109 = vst [vmem:[%s107 + $0x8] sm:$0xff] %v105
    %vm110 = vcmp.ge.f32.partialorder %v94, 0.5
    %vm111 = vcmp.ge.f32.partialorder %v95, 0.5
    %v112 = vmul.f32 %v94, 0.25
    %v113 = vmul.f32 %v95, 0.25
    %v114 = vsel %vm110, 0.0, %v112
    %v115 = vsel %vm111, 0.0, %v113
    %s116 = sadd.s32 %s31, 6
    %s117 = smul.addr %s116, 8
    %s118 = scalar_lea.vmem [#allocation3], %s117
    %v119 = vld [vmem:[%s118] sm:$0xff]
    %v120 = vld [vmem:[%s118 + $0x8] sm:$0xff]
    %v121 = vadd.f32 %v114, %v119
    %v122 = vadd.f32 %v115, %v120
    %v123 = vsub.f32 %v121, 0.5
    %v124 = vsub.f32 %v122, 0.5
    %v125 = vfloor.f32 %v123
    %v126 = vfloor.f32 %v124
    %v127 = vadd.f32 %v125, 1.0
    %v128 = vadd.f32 %v126, 1.0
    %v129 = vmax.f32 %v127, 0.0
    %v130 = vmax.f32 %v128, 0.0
    %v131 = vmin.f32 %v129, 4.0
    %v132 = vmin.f32 %v130, 4.0
    %s133 = smul.addr %s116, 8
    %s134 = scalar_lea.vmem [#allocation6], %s133
    %135 = vst [vmem:[%s134] sm:$0xff] %v131
    %136 = vst [vmem:[%s134 + $0x8] sm:$0xff] %v132
    %vm137 = vcmp.ge.f32.partialorder %v121, 0.5
    %vm138 = vcmp.ge.f32.partialorder %v122, 0.5
    %v139 = vmul.f32 %v121, 0.25
    %v140 = vmul.f32 %v122, 0.25
    %v141 = vsel %vm137, 0.0, %v139
    %v142 = vsel %vm138, 0.0, %v140
    %s143 = sadd.s32 %s31, 8
    %s144 = smul.addr %s143, 8
    %s145 = scalar_lea.vmem [#allocation3], %s144
    %v146 = vld [vmem:[%s145] sm:$0xff]
    %v147 = vld [vmem:[%s145 + $0x8] sm:$0xff]
    %v148 = vadd.f32 %v141, %v146
    %v149 = vadd.f32 %v142, %v147
    %v150 = vsub.f32 %v148, 0.5
    %v151 = vsub.f32 %v149, 0.5
    %v152 = vfloor.f32 %v150
    %v153 = vfloor.f32 %v151
    %v154 = vadd.f32 %v152, 1.0
    %v155 = vadd.f32 %v153, 1.0
    %v156 = vmax.f32 %v154, 0.0
    %v157 = vmax.f32 %v155, 0.0
    %v158 = vmin.f32 %v156, 4.0
    %v159 = vmin.f32 %v157, 4.0
    %s160 = smul.addr %s143, 8
    %s161 = scalar_lea.vmem [#allocation6], %s160
    %162 = vst [vmem:[%s161] sm:$0xff] %v158
    %163 = vst [vmem:[%s161 + $0x8] sm:$0xff] %v159
    %vm164 = vcmp.ge.f32.partialorder %v148, 0.5
    %vm165 = vcmp.ge.f32.partialorder %v149, 0.5
    %v166 = vmul.f32 %v148, 0.25
    %v167 = vmul.f32 %v149, 0.25
    %v168 = vsel %vm164, 0.0, %v166
    %v169 = vsel %vm165, 0.0, %v167
    %s170 = sadd.s32 %s31, 10
    %s171 = smul.addr %s170, 8
    %s172 = scalar_lea.vmem [#allocation3], %s171
    %v173 = vld [vmem:[%s172] sm:$0xff]
    %v174 = vld [vmem:[%s172 + $0x8] sm:$0xff]
    %v175 = vadd.f32 %v168, %v173
    %v176 = vadd.f32 %v169, %v174
    %v177 = vsub.f32 %v175, 0.5
    %v178 = vsub.f32 %v176, 0.5
    %v179 = vfloor.f32 %v177
    %v180 = vfloor.f32 %v178
    %v181 = vadd.f32 %v179, 1.0
    %v182 = vadd.f32 %v180, 1.0
    %v183 = vmax.f32 %v181, 0.0
    %v184 = vmax.f32 %v182, 0.0
    %v185 = vmin.f32 %v183, 4.0
    %v186 = vmin.f32 %v184, 4.0
    %s187 = smul.addr %s170, 8
    %s188 = scalar_lea.vmem [#allocation6], %s187
    %189 = vst [vmem:[%s188] sm:$0xff] %v185
    %190 = vst [vmem:[%s188 + $0x8] sm:$0xff] %v186
    %vm191 = vcmp.ge.f32.partialorder %v175, 0.5
    %vm192 = vcmp.ge.f32.partialorder %v176, 0.5
    %v193 = vmul.f32 %v175, 0.25
    %v194 = vmul.f32 %v176, 0.25
    %v195 = vsel %vm191, 0.0, %v193
    %v196 = vsel %vm192, 0.0, %v194
    %s197 = sadd.s32 %s31, 12
    %s198 = smul.addr %s197, 8
    %s199 = scalar_lea.vmem [#allocation3], %s198
    %v200 = vld [vmem:[%s199] sm:$0xff]
    %v201 = vld [vmem:[%s199 + $0x8] sm:$0xff]
    %v202 = vadd.f32 %v195, %v200
    %v203 = vadd.f32 %v196, %v201
    %v204 = vsub.f32 %v202, 0.5
    %v205 = vsub.f32 %v203, 0.5
    %v206 = vfloor.f32 %v204
    %v207 = vfloor.f32 %v205
    %v208 = vadd.f32 %v206, 1.0
    %v209 = vadd.f32 %v207, 1.0
    %v210 = vmax.f32 %v208, 0.0
    %v211 = vmax.f32 %v209, 0.0
    %v212 = vmin.f32 %v210, 4.0
    %v213 = vmin.f32 %v211, 4.0
    %s214 = smul.addr %s197, 8
    %s215 = scalar_lea.vmem [#allocation6], %s214
    %216 = vst [vmem:[%s215] sm:$0xff] %v212
    %217 = vst [vmem:[%s215 + $0x8] sm:$0xff] %v213
    %vm218 = vcmp.ge.f32.partialorder %v202, 0.5
    %vm219 = vcmp.ge.f32.partialorder %v203, 0.5
    %v220 = vmul.f32 %v202, 0.25
    %v221 = vmul.f32 %v203, 0.25
    %v222 = vsel %vm218, 0.0, %v220
    %v223 = vsel %vm219, 0.0, %v221
    %s224 = sadd.s32 %s31, 14
    %s225 = smul.addr %s224, 8
    %s226 = scalar_lea.vmem [#allocation3], %s225
    %v227 = vld [vmem:[%s226] sm:$0xff]
    %v228 = vld [vmem:[%s226 + $0x8] sm:$0xff]
    %v229 = vadd.f32 %v222, %v227
    %v230 = vadd.f32 %v223, %v228
    %v231 = vsub.f32 %v229, 0.5
    %v232 = vsub.f32 %v230, 0.5
    %v233 = vfloor.f32 %v231
    %v234 = vfloor.f32 %v232
    %v235 = vadd.f32 %v233, 1.0
    %v236 = vadd.f32 %v234, 1.0
    %v237 = vmax.f32 %v235, 0.0
    %v238 = vmax.f32 %v236, 0.0
    %v239 = vmin.f32 %v237, 4.0
    %v240 = vmin.f32 %v238, 4.0
    %s241 = smul.addr %s224, 8
    %s242 = scalar_lea.vmem [#allocation6], %s241
    %243 = vst [vmem:[%s242] sm:$0xff] %v239
    %244 = vst [vmem:[%s242 + $0x8] sm:$0xff] %v240
    %vm245 = vcmp.ge.f32.partialorder %v229, 0.5
    %vm246 = vcmp.ge.f32.partialorder %v230, 0.5
    %v247 = vmul.f32 %v229, 0.25
    %v248 = vmul.f32 %v230, 0.25
    %v249 = vsel %vm245, 0.0, %v247
    %v250 = vsel %vm246, 0.0, %v248
    %251 = vst [vmem:[%s33] sm:$0xff] %v249
    %252 = vst [vmem:[%s33 + $0x8] sm:$0xff] %v250
    // Predicated region
    $region14: #{tpu_custom_call.1} parent=1 // pred_check
      _
    $region15: #{tpu_custom_call.1} parent=1 // pred_check_branch
      %254 = sbr.rel (0) target = $region17
    $region16: #{tpu_custom_call.1} parent=1 // pred_region
      %256 = vsyncadd [#allocation5], 0
      %s257 = sshll.u32 [#allocation6], 4
      %s258 = int_to_ptr.vmem [resolvable:$true] %s257
      %s259 = sshll.u32 %s1, 4
      %s260 = int_to_ptr.hbm [resolvable:$true] %s259
      %265 = dma.vmem_to_hbm [thread:$0]  %s258, 2048, %s260, [#allocation5], 256, 256, 16
    $region17: #{tpu_custom_call.1} parent=1 // pred_fallthru
      _
    // Predicated region
    $region18: #{tpu_custom_call.1} parent=1 // pred_check
      _
    $region19: #{tpu_custom_call.1} parent=1 // pred_check_branch
      %267 = sbr.rel (0) target = $region21
    $region20: #{tpu_custom_call.1} parent=1 // pred_region
      %269 = dma.done [#allocation5], 2048
    $region21: #{tpu_custom_call.1} parent=1 // pred_fallthru
      _
    %270 = vsyncpa [#allocation4], 1
    %271 = vsyncpa [#allocation5], 1

</llo_original>
